<compile_context>
chip_gen: v7x
topology: tpu7x:2x2x1
jax: 0.10.0
libtpu: 0.0.40
codegen_flags: <defaults>
</compile_context>

<pallas_src>
import jax
import jax.numpy as jnp
from jax.experimental import pallas as pl
from jax.experimental.pallas import tpu as pltpu


def attention_kernel(x_ref, w1t_ref, b1_ref, w2_ref, pmask_ref, smask_ref,
                     b2_ref, out_ref):
    Bt, S, D = x_ref.shape
    x = x_ref[...]                                      # (Bt, S, D), native dtype

    # h = tanh(x @ W1^T + b1): MXU matmul in the input dtype, f32 accumulate.
    x2 = x.reshape(Bt * S, D)
    h = jnp.tanh(
        jnp.dot(x2, w1t_ref[...], preferred_element_type=jnp.float32)
        + b1_ref[...].astype(jnp.float32)
    )                                                   # (Bt*S, D) f32

    # Scores directly in (Bt, S) layout (S lane-dense), no (B*S, 1) relayout.
    w2 = w2_ref[...].astype(jnp.float32)                # (1, D)
    s = jnp.sum(h.reshape(Bt, S, D) * w2, axis=-1) + b2_ref[0, 0]   # (Bt, S)

    # Numerically stable exp; the shared per-row max cancels in every prefix
    # softmax, so results are unchanged.
    m = jnp.max(s, axis=-1, keepdims=True)
    e = jnp.exp(s - m)                                  # (Bt, S) f32

    # Prefix sums Z[b,t] = sum_{j<=t} e[b,j] and suffix sums of 1/Z, done with
    # two small (S, S) mask matmuls; masks are resident inputs (see wrapper).
    cum_z = jnp.dot(e, pmask_ref[...], preferred_element_type=jnp.float32)
    inv_z = pl.reciprocal(cum_z, approx=False)
    r = jnp.dot(inv_z, smask_ref[...], preferred_element_type=jnp.float32)

    # out[b, d] = sum_j e[b, j] * R[b, j] * x[b, j, d]
    w = e * r                                           # (Bt, S) f32
    out_ref[...] = jnp.sum(
        w[:, :, None] * x.astype(jnp.float32), axis=1
    ).astype(out_ref.dtype)


def _pick_batch_tile(B, S, D, itemsize, target_bytes=2 * 1024 * 1024):
    """Batch tile whose x block is ~target_bytes.  Must be a multiple of 8
    whenever the batch is actually split (sublane tiling of the (Bt, D)
    output block); ragged last blocks are handled by a cdiv grid."""
    per_row = max(1, S * D * itemsize)
    bt = max(1, target_bytes // per_row)
    if bt >= B:
        return B
    return max(8, (bt // 8) * 8)


def attention_forward(x, w1, b1, w2, b2, *, batch_tile=None, interpret=False):
    """Forward pass of the Attention module.

    x:  (B, S, D) encoder output, any float dtype (bf16 recommended).
    w1: (D, D) attn_1.weight (out, in);  b1: (D,) attn_1.bias
    w2: (1, D) attn_2.weight;            b2: ()  attn_2.bias
    Returns (context_vectors (B, D) float32, attention_vectors=[]).
    """
    B, S, D = x.shape
    x = jnp.asarray(x)

    # Feed the MXU in the input dtype (bf16 is native on v5e/v6e/v7x); the
    # matmul weight is cast once here, everything downstream stays f32.
    matmul_dtype = jnp.bfloat16 if x.dtype == jnp.bfloat16 else jnp.float32
    w1t = jnp.asarray(w1).T.astype(matmul_dtype)              # pre-transposed
    b1v = jnp.asarray(b1).reshape(1, D).astype(jnp.float32)
    w2v = jnp.asarray(w2).reshape(1, D).astype(jnp.float32)
    b2v = jnp.asarray(b2).reshape(1, 1).astype(jnp.float32)   # SMEM scalar

    # Triangular masks for the prefix/suffix sums: built once here, kept
    # VMEM-resident across grid steps via constant index_maps.
    row = jax.lax.broadcasted_iota(jnp.int32, (S, S), 0)
    col = jax.lax.broadcasted_iota(jnp.int32, (S, S), 1)
    pmask = (row <= col).astype(jnp.float32)      # [j, t] = 1 if j <= t
    smask = (row >= col).astype(jnp.float32)      # [t, j] = 1 if t >= j

    if batch_tile is None:
        batch_tile = _pick_batch_tile(B, S, D, x.dtype.itemsize)
    bt = min(batch_tile, B)
    nb = pl.cdiv(B, bt)

    cost = pl.CostEstimate(
        flops=int(2 * B * S * D * D + 4 * B * S * S + 6 * B * S * D),
        transcendentals=int(B * S * D + B * S),
        bytes_accessed=int(
            B * S * D * x.dtype.itemsize       # x read
            + D * D * w1t.dtype.itemsize       # w1^T
            + (2 * D + 1) * 4                  # b1, w2, b2
            + 2 * S * S * 4                    # triangular masks
            + B * D * 4                        # output write
        ),
    )

    ctx = pl.pallas_call(
        attention_kernel,
        out_shape=jax.ShapeDtypeStruct((B, D), jnp.float32),
        grid=(nb,),
        in_specs=[
            pl.BlockSpec((bt, S, D), lambda i: (i, 0, 0)),       # x tile
            pl.BlockSpec((D, D), lambda i: (0, 0)),              # w1^T resident
            pl.BlockSpec((1, D), lambda i: (0, 0)),              # b1 resident
            pl.BlockSpec((1, D), lambda i: (0, 0)),              # w2 resident
            pl.BlockSpec((S, S), lambda i: (0, 0)),              # prefix mask
            pl.BlockSpec((S, S), lambda i: (0, 0)),              # suffix mask
            pl.BlockSpec(memory_space=pltpu.MemorySpace.SMEM),   # b2 scalar
        ],
        out_specs=pl.BlockSpec((bt, D), lambda i: (i, 0)),
        compiler_params=pltpu.CompilerParams(
            dimension_semantics=("parallel",),
            vmem_limit_bytes=32 * 1024 * 1024,
        ),
        cost_estimate=cost,
        interpret=interpret,
    )(x, w1t, b1v, w2v, pmask, smask, b2v)

    # PyTorch forward returns (context_vectors, attention_vectors=[]) when
    # return_attention=False.
    # TODO(synk): return_attention=True (per-timestep attention vectors moved
    # to host numpy) has no single-kernel equivalent and is not produced here.
    return ctx, []


def attention_reference(x, w1, b1, w2, b2):
    """Pure-JAX re-implementation of the original PyTorch loop, for checking."""
    x = jnp.asarray(x, jnp.float32)
    w1 = jnp.asarray(w1, jnp.float32)
    w2 = jnp.asarray(w2, jnp.float32)
    B, S, D = x.shape
    s = jnp.tanh(x @ w1.T + b1) @ w2.T + b2                # (B, S, 1)
    ctxs = []
    for t in range(S):
        w_attn = jax.nn.softmax(s[:, : t + 1, :], axis=1)  # (B, t+1, 1)
        ctxs.append(jnp.sum(w_attn * x[:, : t + 1, :], axis=1))
    ctx = jnp.stack(ctxs, axis=1)                          # (B, S, D)
    return jnp.sum(ctx, axis=1)                            # (B, D)


def xavier_uniform(key, shape):
    fan_out, fan_in = shape
    bound = (6.0 / (fan_in + fan_out)) ** 0.5
    return jax.random.uniform(key, shape, jnp.float32, -bound, bound)


if __name__ == "__main__":
    B, S, D = 2, 8, 32
    key = jax.random.PRNGKey(0)
    kx, k1, k2 = jax.random.split(key, 3)

    x = jax.random.normal(kx, (B, S, D), jnp.float32)
    w1 = xavier_uniform(k1, (D, D))          # attn_1.weight  (out, in)
    b1 = jnp.zeros((D,), jnp.float32)        # attn_1.bias
    w2 = xavier_uniform(k2, (1, D))          # attn_2.weight
    b2 = jnp.zeros((), jnp.float32)          # attn_2.bias

    # float32 input path: tight check against the PyTorch-style loop reference.
    ctx, attn_vecs = attention_forward(x, w1, b1, w2, b2)
    ctx = jax.block_until_ready(ctx)
    ref = attention_reference(x, w1, b1, w2, b2)
    assert jnp.allclose(ctx, ref, atol=1e-4, rtol=1e-4), (
        f"f32 mismatch: max abs err = {jnp.max(jnp.abs(ctx - ref))}"
    )

    # bf16 input path: native-dtype MXU feed (halves HBM traffic / VMEM tile).
    x_bf = x.astype(jnp.bfloat16)
    ctx_bf, _ = attention_forward(x_bf, w1, b1, w2, b2)
    ctx_bf = jax.block_until_ready(ctx_bf)
    ref_bf = attention_reference(
        x_bf.astype(jnp.float32),
        w1.astype(jnp.bfloat16).astype(jnp.float32),
        b1, w2, b2,
    )
    assert jnp.allclose(ctx_bf, ref_bf, atol=1e-2, rtol=1e-2), (
        f"bf16 mismatch: max abs err = {jnp.max(jnp.abs(ctx_bf - ref_bf))}"
    )

    print("KERNEL_OK")
</pallas_src>

<mosaic_0001>
module attributes {stable_mosaic.version = 11 : i64} {
  func.func @attention_kernel(%arg0: i32, %arg1: memref<2x8x32xf32, #tpu.memory_space<vmem>>, %arg2: memref<32x32xf32, #tpu.memory_space<vmem>>, %arg3: memref<1x32xf32, #tpu.memory_space<vmem>>, %arg4: memref<1x32xf32, #tpu.memory_space<vmem>>, %arg5: memref<8x8xf32, #tpu.memory_space<vmem>>, %arg6: memref<8x8xf32, #tpu.memory_space<vmem>>, %arg7: memref<1x1xf32, #tpu.memory_space<smem>>, %arg8: memref<2x32xf32, #tpu.memory_space<vmem>>) attributes {dimension_semantics = [#tpu.dimension_semantics<parallel>], iteration_bounds = array<i64: 1>, scalar_prefetch = 0 : i64, scratch_operands = 0 : i64, tpu.core_type = #tpu.core_type<tc>, window_params = [{transform_indices = @transform_0, window_bounds = array<i64: 2, 8, 32>}, {pipeline_mode = #tpu.pipeline_mode<synchronous>, transform_indices = @transform_1, window_bounds = array<i64: 32, 32>}, {pipeline_mode = #tpu.pipeline_mode<synchronous>, transform_indices = @transform_2, window_bounds = array<i64: 1, 32>}, {pipeline_mode = #tpu.pipeline_mode<synchronous>, transform_indices = @transform_3, window_bounds = array<i64: 1, 32>}, {pipeline_mode = #tpu.pipeline_mode<synchronous>, transform_indices = @transform_4, window_bounds = array<i64: 8, 8>}, {pipeline_mode = #tpu.pipeline_mode<synchronous>, transform_indices = @transform_5, window_bounds = array<i64: 8, 8>}, {transform_indices = @transform_6, window_bounds = array<i64: 1, 1>}, {transform_indices = @transform_7, window_bounds = array<i64: 2, 32>}]} {
    %c0 = arith.constant 0 : index
    %c0_0 = arith.constant 0 : index
    %c0_1 = arith.constant 0 : index
    %0 = vector.load %arg1[%c0, %c0_0, %c0_1] : memref<2x8x32xf32, #tpu.memory_space<vmem>>, vector<2x8x32xf32>
    %1 = vector.shape_cast %0 : vector<2x8x32xf32> to vector<16x32xf32>
    %c0_2 = arith.constant 0 : index
    %c0_3 = arith.constant 0 : index
    %2 = vector.load %arg2[%c0_2, %c0_3] : memref<32x32xf32, #tpu.memory_space<vmem>>, vector<32x32xf32>
    %cst = arith.constant dense<0.000000e+00> : vector<16x32xf32>
    %3 = tpu.matmul %1, %2, %cst {dimension_numbers = #tpu.dot_dimension_numbers<[1], [0], [0], [1], [0, 0, 1, 1], [], []>} : vector<16x32xf32>, vector<32x32xf32>, vector<16x32xf32> -> vector<16x32xf32>
    %c0_4 = arith.constant 0 : index
    %c0_5 = arith.constant 0 : index
    %4 = vector.load %arg3[%c0_4, %c0_5] : memref<1x32xf32, #tpu.memory_space<vmem>>, vector<1x32xf32>
    %5 = vector.broadcast %4 : vector<1x32xf32> to vector<16x32xf32>
    %6 = arith.addf %3, %5 : vector<16x32xf32>
    %7 = math.tanh %6 : vector<16x32xf32>
    %c0_6 = arith.constant 0 : index
    %c0_7 = arith.constant 0 : index
    %8 = vector.load %arg4[%c0_6, %c0_7] : memref<1x32xf32, #tpu.memory_space<vmem>>, vector<1x32xf32>
    %9 = vector.shape_cast %7 : vector<16x32xf32> to vector<2x8x32xf32>
    %10 = vector.shape_cast %8 : vector<1x32xf32> to vector<1x1x32xf32>
    %11 = vector.broadcast %10 : vector<1x1x32xf32> to vector<2x8x32xf32>
    %12 = arith.mulf %9, %11 : vector<2x8x32xf32>
    %cst_8 = arith.constant dense<0.000000e+00> : vector<2x8xf32>
    %13 = vector.multi_reduction <add>, %12, %cst_8 [2] : vector<2x8x32xf32> to vector<2x8xf32>
    %c0_9 = arith.constant 0 : index
    %c0_10 = arith.constant 0 : index
    %14 = memref.load %arg7[%c0_9, %c0_10] : memref<1x1xf32, #tpu.memory_space<smem>>
    %15 = vector.broadcast %14 : f32 to vector<2x8xf32>
    %16 = arith.addf %13, %15 : vector<2x8xf32>
    %cst_11 = arith.constant dense<0xFF800000> : vector<2xf32>
    %17 = vector.multi_reduction <maximumf>, %16, %cst_11 [1] : vector<2x8xf32> to vector<2xf32>
    %18 = vector.shape_cast %17 : vector<2xf32> to vector<2x1xf32>
    %19 = vector.broadcast %18 : vector<2x1xf32> to vector<2x8xf32>
    %20 = arith.subf %16, %19 : vector<2x8xf32>
    %21 = math.exp %20 : vector<2x8xf32>
    %c0_12 = arith.constant 0 : index
    %c0_13 = arith.constant 0 : index
    %22 = vector.load %arg5[%c0_12, %c0_13] : memref<8x8xf32, #tpu.memory_space<vmem>>, vector<8x8xf32>
    %cst_14 = arith.constant dense<0.000000e+00> : vector<2x8xf32>
    %23 = tpu.matmul %21, %22, %cst_14 {dimension_numbers = #tpu.dot_dimension_numbers<[1], [0], [0], [1], [0, 0, 1, 1], [], []>} : vector<2x8xf32>, vector<8x8xf32>, vector<2x8xf32> -> vector<2x8xf32>
    %24 = tpu.reciprocal %23 : vector<2x8xf32> -> vector<2x8xf32>
    %c0_15 = arith.constant 0 : index
    %c0_16 = arith.constant 0 : index
    %25 = vector.load %arg6[%c0_15, %c0_16] : memref<8x8xf32, #tpu.memory_space<vmem>>, vector<8x8xf32>
    %cst_17 = arith.constant dense<0.000000e+00> : vector<2x8xf32>
    %26 = tpu.matmul %24, %25, %cst_17 {dimension_numbers = #tpu.dot_dimension_numbers<[1], [0], [0], [1], [0, 0, 1, 1], [], []>} : vector<2x8xf32>, vector<8x8xf32>, vector<2x8xf32> -> vector<2x8xf32>
    %27 = arith.mulf %21, %26 : vector<2x8xf32>
    %28 = vector.shape_cast %27 : vector<2x8xf32> to vector<2x8x1xf32>
    %29 = vector.broadcast %28 : vector<2x8x1xf32> to vector<2x8x32xf32>
    %30 = arith.mulf %29, %0 : vector<2x8x32xf32>
    %cst_18 = arith.constant dense<0.000000e+00> : vector<2x32xf32>
    %31 = vector.multi_reduction <add>, %30, %cst_18 [1] : vector<2x8x32xf32> to vector<2x32xf32>
    %c0_19 = arith.constant 0 : index
    %c0_20 = arith.constant 0 : index
    %32 = vector.load %arg8[%c0_19, %c0_20] : memref<2x32xf32, #tpu.memory_space<vmem>>, vector<2x32xf32>
    tpu.vector_store %arg8[%c0_19, %c0_20], %31 {strides = array<i32>} : memref<2x32xf32, #tpu.memory_space<vmem>>, vector<2x32xf32>,
    return
  }
  func.func @transform_0(%arg0: i32) -> (i32, i32, i32) {
    %c0_i32 = arith.constant 0 : i32
    %c0_i32_0 = arith.constant 0 : i32
    %c0_i32_1 = arith.constant 0 : i32
    return %arg0, %c0_i32, %c0_i32_0 : i32, i32, i32
  }
  func.func @transform_1(%arg0: i32) -> (i32, i32) {
    %c0_i32 = arith.constant 0 : i32
    %c0_i32_0 = arith.constant 0 : i32
    %c0_i32_1 = arith.constant 0 : i32
    return %c0_i32, %c0_i32_0 : i32, i32
  }
  func.func @transform_2(%arg0: i32) -> (i32, i32) {
    %c0_i32 = arith.constant 0 : i32
    %c0_i32_0 = arith.constant 0 : i32
    %c0_i32_1 = arith.constant 0 : i32
    return %c0_i32, %c0_i32_0 : i32, i32
  }
  func.func @transform_3(%arg0: i32) -> (i32, i32) {
    %c0_i32 = arith.constant 0 : i32
    %c0_i32_0 = arith.constant 0 : i32
    %c0_i32_1 = arith.constant 0 : i32
    return %c0_i32, %c0_i32_0 : i32, i32
  }
  func.func @transform_4(%arg0: i32) -> (i32, i32) {
    %c0_i32 = arith.constant 0 : i32
    %c0_i32_0 = arith.constant 0 : i32
    %c0_i32_1 = arith.constant 0 : i32
    return %c0_i32, %c0_i32_0 : i32, i32
  }
  func.func @transform_5(%arg0: i32) -> (i32, i32) {
    %c0_i32 = arith.constant 0 : i32
    %c0_i32_0 = arith.constant 0 : i32
    %c0_i32_1 = arith.constant 0 : i32
    return %c0_i32, %c0_i32_0 : i32, i32
  }
  func.func @transform_6(%arg0: i32) -> (i32, i32) {
    %c0_i32 = arith.constant 0 : i32
    %c0_i32_0 = arith.constant 0 : i32
    %c0_i32_1 = arith.constant 0 : i32
    return %c0_i32, %c0_i32_0 : i32, i32
  }
  func.func @transform_7(%arg0: i32) -> (i32, i32) {
    %c0_i32 = arith.constant 0 : i32
    %c0_i32_0 = arith.constant 0 : i32
    return %arg0, %c0_i32 : i32, i32
  }
}

</mosaic_0001>

<llo_original>
// kernel: tpu_custom_call.1
$region0: #{tpu_custom_call.1}
  #allocation0 [shape = 'u32[]', space=smem, size = 0x4, offset = 0x4, fixed_abs, tag = 'smem constant byte address 0x4 - core index']
  #allocation1 [shape = 'u32[144,128]{1,0:T(1,128)}', space=vmem, size = 0x12000, scoped, tag = 'internal scratch']
  #allocation2 [shape = 'f32[1,1]{1,0:T(1,128)S(6)}', space=smem, size = 0x200, scoped, tag = 'scoped memory for tpu_custom_call.1']
  %s0 = inlined_call_operand.hbm [shape: f32[2,8,32], index: 0, kind: input, shape index: {}]
  %s1 = inlined_call_operand.hbm [shape: f32[32,32], index: 1, kind: input, shape index: {}]
  %s2 = inlined_call_operand.vmem [shape: f32[1,32], index: 2, kind: input, shape index: {}]
  %s3 = inlined_call_operand.vmem [shape: f32[1,32], index: 3, kind: input, shape index: {}]
  %s4 = inlined_call_operand.vmem [shape: f32[8,8], index: 4, kind: input, shape index: {}]
  %s5 = inlined_call_operand.vmem [shape: f32[8,8], index: 5, kind: input, shape index: {}]
  %s6 = inlined_call_operand.<no memory space> [shape: f32[1,1], index: 6, kind: input, shape index: {}]
  %s7 = inlined_call_operand.hbm [shape: f32[2,32], index: 7, kind: output, shape index: {}]
  %s8 = sld [smem:[#allocation0]]
  $region46: #{tpu_custom_call.1} parent=0
    _
  %s10 = ssub.s32 1, %s8
  %s11 = scalar_select 0, %s10, %s8
  %12 = sst [smem:[#allocation2]] %s6
  $region1: #{tpu_custom_call.1} parent=0
    #allocation3 [shape = 'u8[8192]{0}', space=vmem, size = 0x2000, scoped, tag = 'input window, operand 0, single buffered']
    #allocation4 [shape = 's32[1]{0}', space=sflag, size = 0x4, scoped, tag = 'scoped memory for tpu_custom_call.1']
    #allocation5 [shape = 's32[1]{0}', space=sflag, size = 0x4, scoped, tag = 'scoped memory for tpu_custom_call.1']
    #allocation6 [shape = 'u8[16384]{0}', space=vmem, size = 0x4000, scoped, tag = 'input window, operand 1, single buffered']
    #allocation7 [shape = 's32[1]{0}', space=sflag, size = 0x4, scoped, tag = 'scoped memory for tpu_custom_call.1']
    #allocation8 [shape = 'u8[1024]{0}', space=vmem, size = 0x400, scoped, tag = 'output window, operand 0, single buffered']
    %13 = vsyncpa [#allocation4], 0
    %14 = vsyncpa [#allocation7], 0
    %15 = vsyncpa [#allocation5], 0
    // Predicated region
    $region2: #{tpu_custom_call.1} parent=1 // pred_check
      _
    $region3: #{tpu_custom_call.1} parent=1 // pred_check_branch
      %17 = sbr.rel (0) target = $region5
    $region4: #{tpu_custom_call.1} parent=1 // pred_region
      %s19 = ssub.s32 256, 256
      %20 = vsyncadd [#allocation4], %s19
      %s21 = sshll.u32 [#allocation3], 4
      %s22 = int_to_ptr.vmem [resolvable:$true] %s21
      %27 = dma.hbm_to_vmem [thread:$0]  %s0, 256, %s22, [#allocation4], 128, 128, 8
    $region5: #{tpu_custom_call.1} parent=1 // pred_fallthru
      _
    // Predicated region
    $region6: #{tpu_custom_call.1} parent=1 // pred_check
      _
    $region7: #{tpu_custom_call.1} parent=1 // pred_check_branch
      %29 = sbr.rel (0) target = $region9
    $region8: #{tpu_custom_call.1} parent=1 // pred_region
      %s31 = ssub.s32 512, 512
      %32 = vsyncadd [#allocation7], %s31
      %s33 = sshll.u32 [#allocation6], 4
      %s34 = int_to_ptr.vmem [resolvable:$true] %s33
      %39 = dma.hbm_to_vmem [thread:$0]  %s1, 512, %s34, [#allocation7], 128, 128, 8
    $region9: #{tpu_custom_call.1} parent=1 // pred_fallthru
      _
    // Predicated region
    $region10: #{tpu_custom_call.1} parent=1 // pred_check
      _
    $region11: #{tpu_custom_call.1} parent=1 // pred_check_branch
      %41 = sbr.rel (0) target = $region13
    $region12: #{tpu_custom_call.1} parent=1 // pred_region
      _
    $region13: #{tpu_custom_call.1} parent=1 // pred_fallthru
      _
    // Predicated region
    $region14: #{tpu_custom_call.1} parent=1 // pred_check
      _
    $region15: #{tpu_custom_call.1} parent=1 // pred_check_branch
      %43 = sbr.rel (0) target = $region17
    $region16: #{tpu_custom_call.1} parent=1 // pred_region
      _
    $region17: #{tpu_custom_call.1} parent=1 // pred_fallthru
      _
    // Predicated region
    $region18: #{tpu_custom_call.1} parent=1 // pred_check
      _
    $region19: #{tpu_custom_call.1} parent=1 // pred_check_branch
      %45 = sbr.rel (0) target = $region21
    $region20: #{tpu_custom_call.1} parent=1 // pred_region
      _
    $region21: #{tpu_custom_call.1} parent=1 // pred_fallthru
      _
    // Predicated region
    $region22: #{tpu_custom_call.1} parent=1 // pred_check
      _
    $region23: #{tpu_custom_call.1} parent=1 // pred_check_branch
      %47 = sbr.rel (0) target = $region25
    $region24: #{tpu_custom_call.1} parent=1 // pred_region
      _
    $region25: #{tpu_custom_call.1} parent=1 // pred_fallthru
      _
    // Predicated region
    $region26: #{tpu_custom_call.1} parent=1 // pred_check
      _
    $region27: #{tpu_custom_call.1} parent=1 // pred_check_branch
      %49 = sbr.rel (0) target = $region29
    $region28: #{tpu_custom_call.1} parent=1 // pred_region
      _
    $region29: #{tpu_custom_call.1} parent=1 // pred_fallthru
      _
    // Predicated region
    $region30: #{tpu_custom_call.1} parent=1 // pred_check
      _
    $region31: #{tpu_custom_call.1} parent=1 // pred_check_branch
      %51 = sbr.rel (0) target = $region33
    $region32: #{tpu_custom_call.1} parent=1 // pred_region
      %52 = dma.done [#allocation4], 256
    $region33: #{tpu_custom_call.1} parent=1 // pred_fallthru
      _
    // Predicated region
    $region34: #{tpu_custom_call.1} parent=1 // pred_check
      _
    $region35: #{tpu_custom_call.1} parent=1 // pred_check_branch
      %54 = sbr.rel (0) target = $region37
    $region36: #{tpu_custom_call.1} parent=1 // pred_region
      %55 = dma.done [#allocation7], 512
    $region37: #{tpu_custom_call.1} parent=1 // pred_fallthru
      _
    %v56 = vld [vmem:[#allocation3] sm:$0xff]
    %v57 = vld [vmem:[#allocation3 + $0x8] sm:$0xff]
    %v58 = vld [vmem:[#allocation6] sm:$0xff]
    %v59 = vld [vmem:[#allocation6 + $0x8] sm:$0xff]
    %v60 = vld [vmem:[#allocation6 + $0x10] sm:$0xff]
    %v61 = vld [vmem:[#allocation6 + $0x18] sm:$0xff]
    %v62 = vld [vmem:[%s2] sm:$0x1]
    %v64 = vlaneseq
    %v65 = vshrl.u32 %v64, 7
    %v66 = vsub.s32 0, %v65
    %v67 = vrot.slane %v62, %v66
    %vm69 = vcmask 261120
    %v71 = vsel %vm69, %v56, 0
    %v74 = vsel %vm69, %v57, 0
    %76 = vmatprep.subr.mxu0 0.0
    %77 = vmatpush1.msra.mxu0 %v58
    %78 = vmatprep.subr.mxu0 0.0
    %79 = vmatpush1.msra.mxu0 %v59
    %80 = vmatprep.subr.mxu0 0.0
    %81 = vmatpush1.msra.mxu0 %v60
    %82 = vmatprep.subr.mxu0 0.0
    %83 = vmatpush1.msra.mxu0 %v61
    %84 = vmatprep.subr.mxu0 0.0
    %85 = vmatpush1.msra.mxu0 0.0
    %86 = vmatprep.subr.mxu0 0.0
    %87 = vmatpush1.msra.mxu0 0.0
    %88 = vmatprep.subr.mxu0 0.0
    %89 = vmatpush1.msra.mxu0 0.0
    %90 = vmatprep.subr.mxu0 0.0
    %91 = vmatpush1.msra.mxu0 0.0
    %92 = vmatprep.subr.mxu0 0.0
    %93 = vmatpush1.msra.mxu0 0.0
    %94 = vmatprep.subr.mxu0 0.0
    %95 = vmatpush1.msra.mxu0 0.0
    %96 = vmatprep.subr.mxu0 0.0
    %97 = vmatpush1.msra.mxu0 0.0
    %98 = vmatprep.subr.mxu0 0.0
    %99 = vmatpush1.msra.mxu0 0.0
    %100 = vmatprep.subr.mxu0 0.0
    %101 = vmatpush1.msra.mxu0 0.0
    %102 = vmatprep.subr.mxu0 0.0
    %103 = vmatpush1.msra.mxu0 0.0
    %104 = vmatprep.subr.mxu0 0.0
    %105 = vmatpush1.msra.mxu0 0.0
    %106 = vmatprep.subr.mxu0 0.0
    %107 = vmatpush1.msra.mxu0 0.0
    %108 = vmatprep.subr.mxu0 0.0
    %109 = vmatpush1.msra.mxu0 0.0
    %110 = vmatprep.subr.mxu0 0.0
    %111 = vmatpush1.msra.mxu0 0.0
    %112 = vmatprep.subr.mxu0 0.0
    %113 = vmatpush1.msra.mxu0 0.0
    %114 = vmatprep.subr.mxu0 0.0
    %115 = vmatpush1.msra.mxu0 0.0
    %116 = vmatprep.subr.mxu0 0.0
    %117 = vmatpush1.msra.mxu0 0.0
    %118 = vmatprep.subr.mxu0 0.0
    %119 = vmatpush1.msra.mxu0 0.0
    %120 = vmatprep.subr.mxu0 0.0
    %121 = vmatpush1.msra.mxu0 0.0
    %122 = vmatprep.subr.mxu0 0.0
    %123 = vmatpush1.msra.mxu0 0.0
    %124 = vmatprep.subr.mxu0 0.0
    %125 = vmatpush1.msra.mxu0 0.0
    %126 = vmatprep.subr.mxu0 0.0
    %127 = vmatpush1.msra.mxu0 0.0
    %128 = vmatprep.subr.mxu0 0.0
    %129 = vmatpush1.msra.mxu0 0.0
    %130 = vmatprep.subr.mxu0 0.0
    %131 = vmatpush1.msra.mxu0 0.0
    %132 = vmatprep.subr.mxu0 0.0
    %133 = vmatpush1.msra.mxu0 0.0
    %134 = vmatprep.subr.mxu0 0.0
    %135 = vmatpush1.msra.mxu0 0.0
    %136 = vmatprep.subr.mxu0 0.0
    %137 = vmatpush1.msra.mxu0 0.0
    %138 = vmatprep.subr.mxu0 0.0
    %139 = vmatpush1.msra.mxu0 0.0
    %140 = vmatprep.mubr.f32.mxu0 0.0
    %141 = vmatmul.mubr.f32.gmra.mrb[0].mxu0 %v71
    %v142 = vpop.f32.mrb[0].mxu0
    %v143 = vadd.f32 %v67, %v142
    %v144 = vpop.f32.mrb[0].mxu0
    %145 = vmatprep.mubr.f32.mxu0 0.0
    %146 = vmatmul.mubr.f32.gmra.mrb[0].mxu0 %v74
    %v147 = vpop.f32.mrb[0].mxu0
    %v148 = vadd.f32 %v67, %v147
    %v149 = vpop.f32.mrb[0].mxu0
    %150 = vdwg.mxu0
    %v151 = vtanh.pop %v143
    %v152 = vtanh.pop %v148
    %v153 = vld [vmem:[%s3] sm:$0x1]
    %v155 = vlaneseq
    %v156 = vshrl.u32 %v155, 7
    %v157 = vsub.s32 0, %v156
    %v158 = vrot.slane %v153, %v157
    %v160 = vmul.f32 %v151, %v158
    %v161 = vmul.f32 %v152, %v158
    %v162 = vsel %vm69, %v160, 0.0
    %163 = vadd.xlane.f32.xlu0 %v162
    %v164 = vpop.xlane.xlu0 %163
    %v165 = vsel %vm69, %v161, 0.0
    %166 = vadd.xlane.f32.xlu0 %v165
    %v167 = vpop.xlane.xlu0 %166
    %s168 = sld [smem:[#allocation2]]
    %v169 = vstv %s168
    %v170 = vadd.f32 %v164, %v169
    %v171 = vadd.f32 %v167, %v169
    %v174 = vlaneseq
    %v175 = vand.u32 %v174, 127
    %v176 = vlaneseq
    %v177 = vshrl.u32 %v176, 7
    %v178 = vsub.s32 %v175, %v177
    %v179 = vrot.slane %v170, %v178
    %v180 = vlaneseq
    %v181 = vshrl.u32 %v180, 7
    %v182 = vsub.s32 %v175, %v181
    %v183 = vrot.slane %v171, %v182
    %vm184 = vcmask 1041409
    %v185 = vsel %vm184, %v183, %v179
    %vm187 = vcmask 58368
    %v188 = vsel %vm187, %v185, -inf
    %189 = vmax.xlane.f32.xlu0 %v188
    %v190 = vpop.xlane.xlu0 %189
    %v192 = vlaneseq
    %v193 = vshrl.u32 %v192, 7
    %v194 = vsub.s32 0, %v193
    %v195 = vrot.slane %v190, %v194
    %v196 = vlaneseq
    %v197 = vshrl.u32 %v196, 7
    %v198 = vsub.s32 1, %v197
    %v199 = vrot.slane %v190, %v198
    %v202 = vsub.f32 %v170, %v195
    %v203 = vsub.f32 %v171, %v199
    %v204 = vmul.f32 %v202, 1.442695
    %v205 = vpow.pop %v204
    %v206 = vmul.f32 %v203, 1.442695
    %v207 = vpow.pop %v206
    %v208 = vld [vmem:[%s4] sm:$0xff]
    %211 = vset.pattern.permute.xlu0 0
    %212 = vperm.xlu0 %211, %v205
    %v213 = vpop.permute.xlu0 %212
    %214 = vset.pattern.permute.xlu0 0
    %215 = vperm.xlu0 %214, %v207
    %v216 = vpop.permute.xlu0 %215
    %v217 = vlaneseq
    %v218 = vshrl.u32 %v217, 7
    %v219 = vsub.s32 %v175, %v218
    %v220 = vrot.slane %v213, %v219
    %v221 = vlaneseq
    %v222 = vshrl.u32 %v221, 7
    %v223 = vsub.s32 %v175, %v222
    %v224 = vrot.slane %v216, %v223
    %v225 = vsel %vm184, %v224, %v220
    %vm226 = vcmask 64512
    %v227 = vsel %vm226, %v225, 0
    %229 = vmatprep.subr.mxu0 0.0
    %230 = vmatpush1.msra.mxu0 %v208
    %231 = vmatprep.subr.mxu0 0.0
    %232 = vmatpush1.msra.mxu0 0.0
    %233 = vmatprep.subr.mxu0 0.0
    %234 = vmatpush1.msra.mxu0 0.0
    %235 = vmatprep.subr.mxu0 0.0
    %236 = vmatpush1.msra.mxu0 0.0
    %237 = vmatprep.subr.mxu0 0.0
    %238 = vmatpush1.msra.mxu0 0.0
    %239 = vmatprep.subr.mxu0 0.0
    %240 = vmatpush1.msra.mxu0 0.0
    %241 = vmatprep.subr.mxu0 0.0
    %242 = vmatpush1.msra.mxu0 0.0
    %243 = vmatprep.subr.mxu0 0.0
    %244 = vmatpush1.msra.mxu0 0.0
    %245 = vmatprep.subr.mxu0 0.0
    %246 = vmatpush1.msra.mxu0 0.0
    %247 = vmatprep.subr.mxu0 0.0
    %248 = vmatpush1.msra.mxu0 0.0
    %249 = vmatprep.subr.mxu0 0.0
    %250 = vmatpush1.msra.mxu0 0.0
    %251 = vmatprep.subr.mxu0 0.0
    %252 = vmatpush1.msra.mxu0 0.0
    %253 = vmatprep.subr.mxu0 0.0
    %254 = vmatpush1.msra.mxu0 0.0
    %255 = vmatprep.subr.mxu0 0.0
    %256 = vmatpush1.msra.mxu0 0.0
    %257 = vmatprep.subr.mxu0 0.0
    %258 = vmatpush1.msra.mxu0 0.0
    %259 = vmatprep.subr.mxu0 0.0
    %260 = vmatpush1.msra.mxu0 0.0
    %261 = vmatprep.subr.mxu0 0.0
    %262 = vmatpush1.msra.mxu0 0.0
    %263 = vmatprep.subr.mxu0 0.0
    %264 = vmatpush1.msra.mxu0 0.0
    %265 = vmatprep.subr.mxu0 0.0
    %266 = vmatpush1.msra.mxu0 0.0
    %267 = vmatprep.subr.mxu0 0.0
    %268 = vmatpush1.msra.mxu0 0.0
    %269 = vmatprep.subr.mxu0 0.0
    %270 = vmatpush1.msra.mxu0 0.0
    %271 = vmatprep.subr.mxu0 0.0
    %272 = vmatpush1.msra.mxu0 0.0
    %273 = vmatprep.subr.mxu0 0.0
    %274 = vmatpush1.msra.mxu0 0.0
    %275 = vmatprep.subr.mxu0 0.0
    %276 = vmatpush1.msra.mxu0 0.0
    %277 = vmatprep.subr.mxu0 0.0
    %278 = vmatpush1.msra.mxu0 0.0
    %279 = vmatprep.subr.mxu0 0.0
    %280 = vmatpush1.msra.mxu0 0.0
    %281 = vmatprep.subr.mxu0 0.0
    %282 = vmatpush1.msra.mxu0 0.0
    %283 = vmatprep.subr.mxu0 0.0
    %284 = vmatpush1.msra.mxu0 0.0
    %285 = vmatprep.subr.mxu0 0.0
    %286 = vmatpush1.msra.mxu0 0.0
    %287 = vmatprep.subr.mxu0 0.0
    %288 = vmatpush1.msra.mxu0 0.0
    %289 = vmatprep.subr.mxu0 0.0
    %290 = vmatpush1.msra.mxu0 0.0
    %291 = vmatprep.subr.mxu0 0.0
    %292 = vmatpush1.msra.mxu0 0.0
    %293 = vmatprep.mubr.f32.mxu0 0.0
    %294 = vmatmul.mubr.f32.gmra.mrb[0].mxu0 %v227
    %v295 = vpop.f32.mrb[0].mxu0
    %v296 = vadd.f32 0.0, %v295
    %v297 = vpop.f32.mrb[0].mxu0
    %298 = vdwg.mxu0
    %v299 = vrcp.pop %v296
    %v300 = vld [vmem:[%s5] sm:$0xff]
    %v302 = vsel %vm226, %v299, 0
    %304 = vmatprep.subr.mxu0 0.0
    %305 = vmatpush1.msra.mxu0 %v300
    %306 = vmatprep.subr.mxu0 0.0
    %307 = vmatpush1.msra.mxu0 0.0
    %308 = vmatprep.subr.mxu0 0.0
    %309 = vmatpush1.msra.mxu0 0.0
    %310 = vmatprep.subr.mxu0 0.0
    %311 = vmatpush1.msra.mxu0 0.0
    %312 = vmatprep.subr.mxu0 0.0
    %313 = vmatpush1.msra.mxu0 0.0
    %314 = vmatprep.subr.mxu0 0.0
    %315 = vmatpush1.msra.mxu0 0.0
    %316 = vmatprep.subr.mxu0 0.0
    %317 = vmatpush1.msra.mxu0 0.0
    %318 = vmatprep.subr.mxu0 0.0
    %319 = vmatpush1.msra.mxu0 0.0
    %320 = vmatprep.subr.mxu0 0.0
    %321 = vmatpush1.msra.mxu0 0.0
    %322 = vmatprep.subr.mxu0 0.0
    %323 = vmatpush1.msra.mxu0 0.0
    %324 = vmatprep.subr.mxu0 0.0
    %325 = vmatpush1.msra.mxu0 0.0
    %326 = vmatprep.subr.mxu0 0.0
    %327 = vmatpush1.msra.mxu0 0.0
    %328 = vmatprep.subr.mxu0 0.0
    %329 = vmatpush1.msra.mxu0 0.0
    %330 = vmatprep.subr.mxu0 0.0
    %331 = vmatpush1.msra.mxu0 0.0
    %332 = vmatprep.subr.mxu0 0.0
    %333 = vmatpush1.msra.mxu0 0.0
    %334 = vmatprep.subr.mxu0 0.0
    %335 = vmatpush1.msra.mxu0 0.0
    %336 = vmatprep.subr.mxu0 0.0
    %337 = vmatpush1.msra.mxu0 0.0
    %338 = vmatprep.subr.mxu0 0.0
    %339 = vmatpush1.msra.mxu0 0.0
    %340 = vmatprep.subr.mxu0 0.0
    %341 = vmatpush1.msra.mxu0 0.0
    %342 = vmatprep.subr.mxu0 0.0
    %343 = vmatpush1.msra.mxu0 0.0
    %344 = vmatprep.subr.mxu0 0.0
    %345 = vmatpush1.msra.mxu0 0.0
    %346 = vmatprep.subr.mxu0 0.0
    %347 = vmatpush1.msra.mxu0 0.0
    %348 = vmatprep.subr.mxu0 0.0
    %349 = vmatpush1.msra.mxu0 0.0
    %350 = vmatprep.subr.mxu0 0.0
    %351 = vmatpush1.msra.mxu0 0.0
    %352 = vmatprep.subr.mxu0 0.0
    %353 = vmatpush1.msra.mxu0 0.0
    %354 = vmatprep.subr.mxu0 0.0
    %355 = vmatpush1.msra.mxu0 0.0
    %356 = vmatprep.subr.mxu0 0.0
    %357 = vmatpush1.msra.mxu0 0.0
    %358 = vmatprep.subr.mxu0 0.0
    %359 = vmatpush1.msra.mxu0 0.0
    %360 = vmatprep.subr.mxu0 0.0
    %361 = vmatpush1.msra.mxu0 0.0
    %362 = vmatprep.subr.mxu0 0.0
    %363 = vmatpush1.msra.mxu0 0.0
    %364 = vmatprep.subr.mxu0 0.0
    %365 = vmatpush1.msra.mxu0 0.0
    %366 = vmatprep.subr.mxu0 0.0
    %367 = vmatpush1.msra.mxu0 0.0
    %368 = vmatprep.mubr.f32.mxu0 0.0
    %369 = vmatmul.mubr.f32.gmra.mrb[0].mxu0 %v302
    %v370 = vpop.f32.mrb[0].mxu0
    %v371 = vadd.f32 0.0, %v370
    %v372 = vpop.f32.mrb[0].mxu0
    %373 = vdwg.mxu0
    %v375 = vlaneseq
    %v376 = vshrl.u32 %v375, 7
    %v377 = vsub.s32 0, %v376
    %v378 = vrot.slane %v371, %v377
    %380 = vbcast.lane.b32.xlu0 %v378, 256
    %v381 = vpop.permute.xlu0 %380
    %v382 = vlaneseq
    %v383 = vshrl.u32 %v382, 7
    %v384 = vsub.s32 1, %v383
    %v385 = vrot.slane %v371, %v384
    %387 = vbcast.lane.b32.xlu0 %v385, 256
    %v388 = vpop.permute.xlu0 %387
    %v391 = vmul.f32 %v205, %v381
    %v392 = vmul.f32 %v207, %v388
    %394 = vset.pattern.permute.xlu0 0
    %395 = vperm.xlu0 %394, %v391
    %v396 = vpop.permute.xlu0 %395
    %399 = vset.pattern.permute.xlu0 0
    %400 = vperm.xlu0 %399, %v392
    %v401 = vpop.permute.xlu0 %400
    %v403 = vmul.f32 %v396, %v56
    %v404 = vmul.f32 %v401, %v57
    %v405 = vsel %vm69, %v403, 0.0
    %v406 = vrot.slane %v405, 4
    %v407 = vadd.f32 %v405, %v406
    %v408 = vrot.slane %v407, 2
    %v409 = vadd.f32 %v407, %v408
    %v410 = vrot.slane %v409, 1
    %v411 = vadd.f32 %v409, %v410
    %v412 = vsel %vm69, %v404, 0.0
    %v413 = vrot.slane %v412, 4
    %v414 = vadd.f32 %v412, %v413
    %v415 = vrot.slane %v414, 2
    %v416 = vadd.f32 %v414, %v415
    %v417 = vrot.slane %v416, 1
    %v418 = vadd.f32 %v416, %v417
    %v421 = vsel %vm184, %v418, %v411
    %vm423 = vcmask 254976
    %424 = vst.msk [vmem:[#allocation8] sm:$0x3] %vm423, %v421
    // Predicated region
    $region38: #{tpu_custom_call.1} parent=1 // pred_check
      _
    $region39: #{tpu_custom_call.1} parent=1 // pred_check_branch
      %426 = sbr.rel (0) target = $region41
    $region40: #{tpu_custom_call.1} parent=1 // pred_region
      %s428 = ssub.s32 32, 32
      %429 = vsyncadd [#allocation5], %s428
      %s431 = sshll.u32 [#allocation8], 4
      %s432 = int_to_ptr.vmem [resolvable:$true] %s431
      %434 = dma.vmem_to_hbm [thread:$0]  %s432, 32, %s7, [#allocation5]
    $region41: #{tpu_custom_call.1} parent=1 // pred_fallthru
      _
    // Predicated region
    $region42: #{tpu_custom_call.1} parent=1 // pred_check
      _
    $region43: #{tpu_custom_call.1} parent=1 // pred_check_branch
      %436 = sbr.rel (0) target = $region45
    $region44: #{tpu_custom_call.1} parent=1 // pred_region
      %437 = dma.done [#allocation5], 32
    $region45: #{tpu_custom_call.1} parent=1 // pred_fallthru
      _
    %438 = vsyncpa [#allocation4], 1
    %439 = vsyncpa [#allocation7], 1
    %440 = vsyncpa [#allocation5], 1

</llo_original>
